<compile_context>
chip_gen: v5e
topology: v5e:2x2
jax: 0.10.0
libtpu: 0.0.40
codegen_flags: <defaults>
</compile_context>

<pallas_src>
import functools
import re

import jax
import jax.numpy as jnp
from jax.experimental import pallas as pl
from jax.experimental.pallas import tpu as pltpu

_LANE = 128
_SUBLANE = 8


def _tpu_generation() -> int:
    """Best-effort TPU generation (5, 6, 7, ...); 0 if unknown."""
    try:
        kind = jax.devices()[0].device_kind  # e.g. "TPU v5 lite", "TPU v6e"
    except Exception:
        return 0
    m = re.search(r"(\d+)", kind)
    return int(m.group(1)) if m else 0


def _round_up(a, b):
    return ((a + b - 1) // b) * b


def _h_swish_kernel(x_ref, o_ref, *, compute_dtype):
    # h_sigmoid(x) = relu6(x + 3) / 6 ; h_swish(x) = x * h_sigmoid(x)
    x = x_ref[...].astype(compute_dtype)
    three = jnp.asarray(3.0, compute_dtype)
    zero = jnp.asarray(0.0, compute_dtype)
    six = jnp.asarray(6.0, compute_dtype)
    one_sixth = jnp.asarray(1.0 / 6.0, compute_dtype)
    hsig = jnp.clip(x + three, zero, six) * one_sixth
    o_ref[...] = (x * hsig).astype(o_ref.dtype)


@jax.jit
def h_swish(x):
    """Elementwise h_swish on an arbitrary-shaped (e.g. NCHW) tensor."""
    orig_shape = x.shape
    orig_dtype = x.dtype
    n_elem = x.size
    itemsize = jnp.dtype(orig_dtype).itemsize
    gen = _tpu_generation()  # static at trace time

    # Compute dtype: native bf16 on v6e/v7x (bf16 VPU), f32 everywhere else
    # (exact for f32 storage; required on v5e which has no bf16 VALU).
    if orig_dtype == jnp.bfloat16 and gen >= 6:
        compute_dtype = jnp.bfloat16
    else:
        compute_dtype = jnp.float32

    # Flatten to a lane-dense (rows, 128) slab.  Only the rare case where the
    # element count is not a multiple of 128 needs a pad (and a trailing slice).
    padded = _round_up(n_elem, _LANE)
    x_flat = jnp.ravel(x)
    if padded != n_elem:
        x_flat = jnp.pad(x_flat, (0, padded - n_elem))
    rows = padded // _LANE
    x2d = x_flat.reshape(rows, _LANE)

    # Generation-dependent block byte budget (see header comment).
    block_bytes = (4 if gen >= 6 else 2) * 1024 * 1024
    # Sublane-packing minimum rows: 8 (f32) / 16 (bf16/f16) / 32 (int8).
    min_rows = _SUBLANE * max(1, 4 // itemsize)
    tr = block_bytes // (_LANE * itemsize)
    tr = max(min_rows, (tr // min_rows) * min_rows)
    tr = min(tr, rows)  # full-extent block if the tensor is small
    grid = (pl.cdiv(rows, tr),)  # partial edge block (if any) is masked by Pallas

    kernel = functools.partial(_h_swish_kernel, compute_dtype=compute_dtype)

    out2d = pl.pallas_call(
        kernel,
        out_shape=jax.ShapeDtypeStruct((rows, _LANE), orig_dtype),
        grid_spec=pltpu.PrefetchScalarGridSpec(
            num_scalar_prefetch=0,
            grid=grid,
            in_specs=[pl.BlockSpec((tr, _LANE), lambda i: (i, 0))],
            out_specs=pl.BlockSpec((tr, _LANE), lambda i: (i, 0)),
        ),
        compiler_params=pltpu.CompilerParams(
            dimension_semantics=("parallel",),
        ),
        cost_estimate=pl.CostEstimate(
            flops=5 * n_elem,
            transcendentals=0,
            bytes_accessed=2 * n_elem * itemsize,
        ),
    )(x2d)

    out_flat = out2d.reshape(-1)
    if padded != n_elem:
        out_flat = out_flat[:n_elem]
    return out_flat.reshape(orig_shape)


def h_swish_ref(x):
    xf = x.astype(jnp.float32)
    return (xf * (jnp.clip(xf + 3.0, 0.0, 6.0) / 6.0)).astype(x.dtype)


if __name__ == "__main__":
    key = jax.random.PRNGKey(0)

    # Main check: small NCHW input consistent with the module's usage.
    x = jax.random.normal(key, (2, 4, 16, 16), dtype=jnp.float32) * 4.0
    out = jax.block_until_ready(h_swish(x))
    ref = h_swish_ref(x)
    assert out.shape == x.shape and out.dtype == x.dtype
    assert jnp.allclose(out, ref, atol=1e-6, rtol=1e-6)

    # Ragged-size check (exercises the lane-pad tail path).
    k1, k2 = jax.random.split(key)
    x2 = jax.random.normal(k1, (3, 5, 7, 9), dtype=jnp.float32) * 4.0
    out2 = jax.block_until_ready(h_swish(x2))
    assert jnp.allclose(out2, h_swish_ref(x2), atol=1e-6, rtol=1e-6)

    # bf16 storage check (native bf16 compute on v6e/v7x, f32 on v5e/older).
    x3 = (jax.random.normal(k2, (2, 4, 16, 16), dtype=jnp.float32) * 4.0).astype(
        jnp.bfloat16
    )
    out3 = jax.block_until_ready(h_swish(x3))
    assert out3.dtype == jnp.bfloat16
    assert jnp.allclose(
        out3.astype(jnp.float32), h_swish_ref(x3).astype(jnp.float32),
        atol=5e-2, rtol=5e-2,
    )

    print("KERNEL_OK")
</pallas_src>

<mosaic_0001>
module attributes {stable_mosaic.version = 11 : i64} {
  func.func @_h_swish_kernel(%arg0: i32, %arg1: memref<16x128xf32, #tpu.memory_space<vmem>>, %arg2: memref<16x128xf32, #tpu.memory_space<vmem>>) attributes {dimension_semantics = [#tpu.dimension_semantics<parallel>], iteration_bounds = array<i64: 1>, scalar_prefetch = 0 : i64, scratch_operands = 0 : i64, tpu.core_type = #tpu.core_type<tc>, window_params = [{transform_indices = @transform_0, window_bounds = array<i64: 16, 128>}, {transform_indices = @transform_1, window_bounds = array<i64: 16, 128>}]} {
    %c0 = arith.constant 0 : index
    %c0_0 = arith.constant 0 : index
    %0 = vector.load %arg1[%c0, %c0_0] : memref<16x128xf32, #tpu.memory_space<vmem>>, vector<16x128xf32>
    %cst = arith.constant 3.000000e+00 : f32
    %1 = vector.broadcast %cst : f32 to vector<16x128xf32>
    %2 = arith.addf %0, %1 : vector<16x128xf32>
    %cst_1 = arith.constant 0.000000e+00 : f32
    %cst_2 = arith.constant 6.000000e+00 : f32
    %3 = vector.broadcast %cst_1 : f32 to vector<16x128xf32>
    %4 = arith.maximumf %3, %2 : vector<16x128xf32>
    %5 = vector.broadcast %cst_2 : f32 to vector<16x128xf32>
    %6 = arith.minimumf %5, %4 : vector<16x128xf32>
    %cst_3 = arith.constant 0.166666672 : f32
    %7 = vector.broadcast %cst_3 : f32 to vector<16x128xf32>
    %8 = arith.mulf %6, %7 : vector<16x128xf32>
    %9 = arith.mulf %0, %8 : vector<16x128xf32>
    %c0_4 = arith.constant 0 : index
    %c0_5 = arith.constant 0 : index
    %10 = vector.load %arg2[%c0_4, %c0_5] : memref<16x128xf32, #tpu.memory_space<vmem>>, vector<16x128xf32>
    tpu.vector_store %arg2[%c0_4, %c0_5], %9 {strides = array<i32>} : memref<16x128xf32, #tpu.memory_space<vmem>>, vector<16x128xf32>,
    return
  }
  func.func @transform_0(%arg0: i32) -> (i32, i32) {
    %c0_i32 = arith.constant 0 : i32
    %c0_i32_0 = arith.constant 0 : i32
    return %arg0, %c0_i32 : i32, i32
  }
  func.func @transform_1(%arg0: i32) -> (i32, i32) {
    %c0_i32 = arith.constant 0 : i32
    %c0_i32_0 = arith.constant 0 : i32
    return %arg0, %c0_i32 : i32, i32
  }
}

</mosaic_0001>

<llo_original>
// kernel: h_swish.1
$region0: #{h_swish.1}
  #allocation0 [shape = 'u32[]', space=smem, size = 0x4, offset = 0x4, fixed_abs, tag = 'smem constant byte address 0x4 - core index']
  #allocation1 [shape = 'u32[72,128]{1,0:T(1,128)}', space=vmem, size = 0x9000, scoped, tag = 'internal scratch']
  %s0 = inlined_call_operand.vmem [shape: f32[16,128], index: 0, kind: input, shape index: {}]
  %s1 = inlined_call_operand.vmem [shape: f32[16,128], index: 1, kind: output, shape index: {}]
  %s2 = sld [smem:[#allocation0]]
  $region14: #{h_swish.1} parent=0
    _
  %s4 = ssub.s32 1, %s2
  %s5 = scalar_select 0, %s4, %s2
  // Predicated region
  $region2: #{h_swish.1} parent=0 // pred_check
    _
  $region3: #{h_swish.1} parent=0 // pred_check_branch
    %7 = sbr.rel (0) target = $region5
  $region4: #{h_swish.1} parent=0 // pred_region
    _
  $region5: #{h_swish.1} parent=0 // pred_fallthru
    _
  %v8 = vld [vmem:[%s0] sm:$0xff]
  %v9 = vld [vmem:[%s0 + $0x8] sm:$0xff]
  %v10 = vadd.f32 %v8, 3.0
  %v11 = vadd.f32 %v9, 3.0
  %v12 = vmax.f32 %v10, 0.0
  %v13 = vmax.f32 %v11, 0.0
  %v14 = vmin.f32 %v12, 6.0
  %v15 = vmin.f32 %v13, 6.0
  %v16 = vmul.f32 %v14, 0.16666667
  %v17 = vmul.f32 %v15, 0.16666667
  %v18 = vmul.f32 %v8, %v16
  %v19 = vmul.f32 %v9, %v17
  %20 = vst [vmem:[%s1] sm:$0xff] %v18
  %21 = vst [vmem:[%s1 + $0x8] sm:$0xff] %v19
  // Predicated region
  $region6: #{h_swish.1} parent=0 // pred_check
    _
  $region7: #{h_swish.1} parent=0 // pred_check_branch
    %23 = sbr.rel (0) target = $region9
  $region8: #{h_swish.1} parent=0 // pred_region
    _
  $region9: #{h_swish.1} parent=0 // pred_fallthru
    _
  // Predicated region
  $region10: #{h_swish.1} parent=0 // pred_check
    _
  $region11: #{h_swish.1} parent=0 // pred_check_branch
    %25 = sbr.rel (0) target = $region13
  $region12: #{h_swish.1} parent=0 // pred_region
    _
  $region13: #{h_swish.1} parent=0 // pred_fallthru
    _

</llo_original>
